<compile_context>
chip_gen: v7x
topology: tpu7x:2x2x1
jax: 0.10.0
libtpu: 0.0.40
codegen_flags: <defaults>
</compile_context>

<pallas_src>
import functools

import numpy as np
import jax
import jax.numpy as jnp
from jax.experimental import pallas as pl
from jax.experimental.pallas import tpu as pltpu


# ----------------------------- fused Pallas kernel ------------------------------

def mha_fused_kernel(q_ref, k_ref, v_ref, cap_ref,
                     wq_ref, wk_ref, wv_ref,
                     r_ref, e_ref, he_ref, wout_ref, consts_ref,
                     *rest, n_head, seg, eps, return_attn):
    """One token tile (TM rows) of the fused MHA forward.

    Wide (128-lane) arrays use the (head, neighbor, d_v) lane layout for the score /
    attention / value path and (head, neighbor, d_k) for the q/k projections.
      q_ref     : (TM, d_model)           f32  (also the residual)
      k_ref     : (TM, NN*d_model)        bf16
      v_ref     : (TM, NN*d_model)        bf16
      cap_ref   : (TM, H*NN)              f32  (-1e10 masked / +3e38 keep)
      wq/wk/wv  : packed projection weights (bf16), neighbor transpose folded in
      r_ref     : (H*NN*d_k, H*NN*d_v)    bf16  fused seg_k @ bcast_v routing
      e_ref     : (H*NN, H*NN*d_v)        f32   (h,n) -> lane expansion
      he_ref    : (H, H*NN*d_v)           f32   head -> lane expansion
      wout_ref  : (H*NN*d_v, d_model)     bf16  w_fc folded into the value reduction
      consts_ref: (3, d_model)            f32   rows: b_fc, ln_gamma, ln_beta
    """
    if return_attn:
        sel_ref, out_ref, attn_ref = rest
    else:
        (out_ref,) = rest
    f32, bf16 = jnp.float32, jnp.bfloat16

    q = q_ref[...]                                                        # (TM, Dm) f32

    # QKV projections (1/temperature folded into wq; neighbor transpose folded into wk/wv).
    qb = jnp.dot(q.astype(bf16), wq_ref[...], preferred_element_type=f32)   # (TM, H*NN*Dk)
    kb = jnp.dot(k_ref[...], wk_ref[...], preferred_element_type=f32)       # (TM, H*NN*Dk)
    vb = jnp.dot(v_ref[...], wv_ref[...], preferred_element_type=f32)       # (TM, H*NN*Dv)

    # Scores, produced directly in the (head, neighbor, d_v)-broadcast 128-lane layout.
    s = jnp.dot((qb * kb).astype(bf16), r_ref[...],
                preferred_element_type=f32)                                  # (TM, H*NN*Dv)

    # Exact masked_fill(-1e10) via min with a cap, expanded from the narrow mask stream.
    cap = jnp.dot(cap_ref[...], e_ref[...], preferred_element_type=f32)      # (TM, H*NN*Dv)
    s = jnp.minimum(s, cap)

    # Per-head softmax: narrow slice reductions for max/sum, tiny matmul re-broadcast,
    # everything else stays 128-lane dense.
    mx = jnp.concatenate(
        [jnp.max(s[:, h * seg:(h + 1) * seg], axis=-1, keepdims=True)
         for h in range(n_head)], axis=-1)                                   # (TM, H)
    s = s - jnp.dot(mx, he_ref[...], preferred_element_type=f32)
    e = jnp.exp(s)
    dn = jnp.concatenate(
        [jnp.sum(e[:, h * seg:(h + 1) * seg], axis=-1, keepdims=True)
         for h in range(n_head)], axis=-1)                                   # (TM, H)
    dn = jnp.dot(dn, he_ref[...], preferred_element_type=f32)
    attn_b = e * pl.reciprocal(dn, approx=True)    # = attn / d_v, replicated over d_v lanes
    # TODO(synk): attention dropout / output dropout are identity (eval-mode semantics).

    if return_attn:
        # Summing the d_v replicas recovers the true per-(head, neighbor) probability.
        attn_ref[...] = jnp.dot(attn_b.astype(bf16), sel_ref[...],
                                preferred_element_type=f32)                  # (TM, H*NN)

    # Neighbor-weighted values + output FC in a single matmul (w_fc folded into wout).
    y = jnp.dot((attn_b * vb).astype(bf16), wout_ref[...],
                preferred_element_type=f32)                                  # (TM, Dm)

    consts = consts_ref[...]                       # rows: b_fc, ln_gamma, ln_beta
    z = y + consts[0:1, :] + q
    mu = jnp.mean(z, axis=-1, keepdims=True)
    var = jnp.mean((z - mu) ** 2, axis=-1, keepdims=True)
    out_ref[...] = (z - mu) * jax.lax.rsqrt(var + f32(eps)) * consts[1:2, :] + consts[2:3, :]


def _choose_tile(m):
    """Large lane-dense tiles; several grid steps when the problem is big enough."""
    m8 = ((m + 7) // 8) * 8
    if m8 <= 512:
        return m8                 # tiny problem: one step holding everything
    for tm in (512, 256):
        if m >= 8 * tm:           # plenty of steps: take the biggest tile
            return tm
    return 256                    # mid-size: a few 256-row steps


# ----------------------------- module wrapper -------------------------------

def multi_head_attention(q, k, v, mask, params, *, n_head, d_k, d_v,
                         return_attn=True, eps=1e-5):
    B, N_src, d_model = q.shape
    N_ngh = k.shape[1]
    assert N_ngh % N_src == 0
    nn = N_ngh // N_src
    H = n_head
    M = B * N_src
    temperature = float(np.power(d_k, 0.5))
    f32, bf16 = jnp.float32, jnp.bfloat16

    # ---- token-major activations (neighbors concatenated along lanes) ----
    q2 = q.reshape(M, d_model).astype(f32)                   # residual -> keep f32
    k_tok = k.reshape(M, nn * d_model).astype(bf16)
    v_tok = v.reshape(M, nn * d_model).astype(bf16)

    # ---- packed weights / routing matrices (built once, pure param prep) ----
    wq = (params["w_qs"].astype(f32) / temperature).reshape(d_model, H, 1, d_k)
    wq_big = jnp.broadcast_to(wq, (d_model, H, nn, d_k)) \
        .reshape(d_model, H * nn * d_k).astype(bf16)
    eye_nn = jnp.eye(nn, dtype=f32)
    wks = params["w_ks"].astype(f32).reshape(d_model, H, d_k)
    wk_big = jnp.einsum("chd,jJ->jchJd", wks, eye_nn) \
        .reshape(nn * d_model, H * nn * d_k).astype(bf16)
    wvs = params["w_vs"].astype(f32).reshape(d_model, H, d_v)
    wv_big = jnp.einsum("chd,jJ->jchJd", wvs, eye_nn) \
        .reshape(nn * d_model, H * nn * d_v).astype(bf16)

    # Fused routing matrix: reduce over d_k and broadcast across the d_v lanes in one go.
    r_mat = jnp.kron(jnp.eye(H * nn, dtype=f32), jnp.ones((d_k, d_v), f32)).astype(bf16)
    # (head, neighbor) -> 128-lane expansion (mask cap), head -> 128-lane expansion.
    e_mat = jnp.kron(jnp.eye(H * nn, dtype=f32), jnp.ones((1, d_v), f32))
    he_mat = jnp.kron(jnp.eye(H, dtype=f32), jnp.ones((1, nn * d_v), f32))
    # w_fc folded into the value reduction; *d_v compensates the replicated-softmax scale.
    wout = (float(d_v) * jnp.broadcast_to(
        params["w_fc"].astype(f32).reshape(H, 1, d_v, d_model),
        (H, nn, d_v, d_model)).reshape(H * nn * d_v, d_model)).astype(bf16)
    sel = e_mat.T.astype(bf16)                                # (H*nn*d_v, H*nn)
    consts = jnp.concatenate([params["b_fc"].astype(f32),
                              params["ln_gamma"].astype(f32),
                              params["ln_beta"].astype(f32)], axis=0)   # (3, d_model)

    # ---- mask -> narrow "cap" stream with the exact PyTorch view/repeat ordering ----
    # Score row (t*H + h) reads mask row ((t*H + h) % M), like mask.repeat(n_head, 1, 1).
    mflat = mask.astype(bool).reshape(M, nn)
    src = (jnp.arange(M)[:, None] * H + jnp.arange(H)[None, :]) % M         # (M, H)
    mask_hn = mflat[src].reshape(M, H * nn)
    cap = jnp.where(mask_hn, jnp.float32(-1e10), jnp.float32(3e38))         # (M, H*nn)

    # ---- tiling: big lane-dense tiles, pad the token axis, slice the tail off ----
    TM = _choose_tile(M)
    M_pad = ((M + TM - 1) // TM) * TM
    if M_pad != M:
        pad = ((0, M_pad - M), (0, 0))
        q2 = jnp.pad(q2, pad)
        k_tok = jnp.pad(k_tok, pad)
        v_tok = jnp.pad(v_tok, pad)
        cap = jnp.pad(cap, pad)
    grid = (M_pad // TM,)

    def tile_spec(width):
        return pl.BlockSpec((TM, width), lambda i: (i, 0))

    def full_spec(rows, cols):
        return pl.BlockSpec((rows, cols), lambda i: (0, 0))

    in_specs = [
        tile_spec(d_model),                      # q (residual + Q matmul operand)
        tile_spec(nn * d_model),                 # k_tok
        tile_spec(nn * d_model),                 # v_tok
        tile_spec(H * nn),                       # mask cap (narrow stream)
        full_spec(d_model, H * nn * d_k),        # wq_big
        full_spec(nn * d_model, H * nn * d_k),   # wk_big
        full_spec(nn * d_model, H * nn * d_v),   # wv_big
        full_spec(H * nn * d_k, H * nn * d_v),   # r_mat
        full_spec(H * nn, H * nn * d_v),         # e_mat
        full_spec(H, H * nn * d_v),              # he_mat
        full_spec(H * nn * d_v, d_model),        # wout (w_fc folded in)
        full_spec(3, d_model),                   # consts (b_fc, gamma, beta)
    ]
    args = [q2, k_tok, v_tok, cap, wq_big, wk_big, wv_big,
            r_mat, e_mat, he_mat, wout, consts]
    out_shape = [jax.ShapeDtypeStruct((M_pad, d_model), f32)]
    out_specs = [pl.BlockSpec((TM, d_model), lambda i: (i, 0))]
    if return_attn:
        in_specs.append(full_spec(H * nn * d_v, H * nn))
        args.append(sel)
        out_shape.append(jax.ShapeDtypeStruct((M_pad, H * nn), f32))
        out_specs.append(pl.BlockSpec((TM, H * nn), lambda i: (i, 0)))

    results = pl.pallas_call(
        functools.partial(mha_fused_kernel, n_head=H, seg=nn * d_v, eps=eps,
                          return_attn=return_attn),
        grid=grid,
        out_shape=tuple(out_shape),
        in_specs=in_specs,
        out_specs=tuple(out_specs),
        compiler_params=pltpu.CompilerParams(dimension_semantics=("parallel",)),
    )(*args)

    output = results[0][:M].reshape(B, N_src, d_model)
    if return_attn:
        return output, results[1][:M].reshape(B, N_src, H, nn)
    return output, None


# ----------------------------- pure-JAX reference ----------------------------

def reference(q, k, v, mask, params, *, n_head, d_k, d_v):
    B, N_src, d_model = q.shape
    N_ngh = k.shape[1]
    nn_ = N_ngh // N_src
    residual = q
    qp = (q.reshape(B * N_src, d_model) @ params["w_qs"]).reshape(B, N_src, 1, n_head, d_k)
    kp = (k.reshape(B * N_ngh, d_model) @ params["w_ks"]).reshape(B, N_src, nn_, n_head, d_k)
    vp = (v.reshape(B * N_ngh, d_model) @ params["w_vs"]).reshape(B, N_src, nn_, n_head, d_v)
    qp = jnp.transpose(qp, (0, 1, 3, 2, 4)).reshape(B * N_src * n_head, 1, d_k)
    kp = jnp.transpose(kp, (0, 1, 3, 2, 4)).reshape(B * N_src * n_head, nn_, d_k)
    vp = jnp.transpose(vp, (0, 1, 3, 2, 4)).reshape(B * N_src * n_head, nn_, d_v)
    m = jnp.tile(mask.reshape(B * N_src, 1, nn_), (n_head, 1, 1))
    s = jnp.einsum("bqd,bkd->bqk", qp, kp) / np.power(d_k, 0.5)
    s = jnp.where(m, -10000000000.0, s)
    p = jax.nn.softmax(s, axis=2)
    o = jnp.einsum("bqk,bkd->bqd", p, vp).reshape(B * N_src, n_head * d_v)
    y = o @ params["w_fc"] + params["b_fc"] + residual.reshape(B * N_src, d_model)
    mu = jnp.mean(y, axis=-1, keepdims=True)
    var = jnp.mean((y - mu) ** 2, axis=-1, keepdims=True)
    y = (y - mu) / jnp.sqrt(var + 1e-5) * params["ln_gamma"] + params["ln_beta"]
    return y.reshape(B, N_src, d_model), p.reshape(B, N_src, n_head, nn_)


# ----------------------------------- main ------------------------------------

if __name__ == "__main__":
    # Small shapes consistent with the module's forward.
    B, N_src, num_neighbors = 2, 4, 4
    N_ngh = N_src * num_neighbors
    n_head, d_model, d_k, d_v = 2, 32, 16, 16

    key = jax.random.PRNGKey(0)
    kq, kk, kv, km, k1, k2, k3, k4, k5 = jax.random.split(key, 9)

    q = jax.random.normal(kq, (B, N_src, d_model), jnp.float32)
    k = jax.random.normal(kk, (B, N_ngh, d_model), jnp.float32)
    v = jax.random.normal(kv, (B, N_ngh, d_model), jnp.float32)
    mask = jax.random.bernoulli(km, 0.25, (B, N_src, num_neighbors))  # True = masked

    # Deterministic parameter init matching the module's __init__ distributions.
    std_qk = np.sqrt(2.0 / (d_model + d_k))
    std_v = np.sqrt(2.0 / (d_model + d_v))
    std_fc = np.sqrt(2.0 / (n_head * d_v + d_model))  # xavier_normal
    b_bound = 1.0 / np.sqrt(n_head * d_v)             # PyTorch Linear default bias init
    params = {
        "w_qs": std_qk * jax.random.normal(k1, (d_model, n_head * d_k), jnp.float32),
        "w_ks": std_qk * jax.random.normal(k2, (d_model, n_head * d_k), jnp.float32),
        "w_vs": std_v * jax.random.normal(k3, (d_model, n_head * d_v), jnp.float32),
        "w_fc": std_fc * jax.random.normal(k4, (n_head * d_v, d_model), jnp.float32),
        "b_fc": jax.random.uniform(
            k5, (1, d_model), jnp.float32, minval=-b_bound, maxval=b_bound
        ),
        "ln_gamma": jnp.ones((1, d_model), jnp.float32),
        "ln_beta": jnp.zeros((1, d_model), jnp.float32),
    }

    output, attn_map = multi_head_attention(
        q, k, v, mask, params, n_head=n_head, d_k=d_k, d_v=d_v, return_attn=True
    )
    output = jax.block_until_ready(output)
    attn_map = jax.block_until_ready(attn_map)

    ref_out, ref_attn = reference(q, k, v, mask, params, n_head=n_head, d_k=d_k, d_v=d_v)

    assert output.shape == (B, N_src, d_model)
    assert attn_map.shape == (B, N_src, n_head, num_neighbors)
    assert bool(jnp.all(jnp.isfinite(output)))
    assert bool(jnp.all(jnp.isfinite(attn_map)))
    # bf16 matmul operands (k/v and packed weights) -> compare at slightly relaxed tol.
    assert bool(jnp.allclose(output, ref_out, atol=2e-2, rtol=2e-2))
    assert bool(jnp.allclose(attn_map, ref_attn, atol=2e-2, rtol=2e-2))

    print("KERNEL_OK")
</pallas_src>

<mosaic_0001>
module attributes {stable_mosaic.version = 11 : i64} {
  func.func @mha_fused_kernel(%arg0: i32, %arg1: memref<8x32xf32, #tpu.memory_space<vmem>>, %arg2: memref<8x128xbf16, #tpu.memory_space<vmem>>, %arg3: memref<8x128xbf16, #tpu.memory_space<vmem>>, %arg4: memref<8x8xf32, #tpu.memory_space<vmem>>, %arg5: memref<32x128xbf16, #tpu.memory_space<vmem>>, %arg6: memref<128x128xbf16, #tpu.memory_space<vmem>>, %arg7: memref<128x128xbf16, #tpu.memory_space<vmem>>, %arg8: memref<128x128xbf16, #tpu.memory_space<vmem>>, %arg9: memref<8x128xf32, #tpu.memory_space<vmem>>, %arg10: memref<2x128xf32, #tpu.memory_space<vmem>>, %arg11: memref<128x32xbf16, #tpu.memory_space<vmem>>, %arg12: memref<3x32xf32, #tpu.memory_space<vmem>>, %arg13: memref<128x8xbf16, #tpu.memory_space<vmem>>, %arg14: memref<8x32xf32, #tpu.memory_space<vmem>>, %arg15: memref<8x8xf32, #tpu.memory_space<vmem>>) attributes {dimension_semantics = [#tpu.dimension_semantics<parallel>], iteration_bounds = array<i64: 1>, scalar_prefetch = 0 : i64, scratch_operands = 0 : i64, tpu.core_type = #tpu.core_type<tc>, window_params = [{transform_indices = @transform_0, window_bounds = array<i64: 8, 32>}, {transform_indices = @transform_1, window_bounds = array<i64: 8, 128>}, {transform_indices = @transform_2, window_bounds = array<i64: 8, 128>}, {transform_indices = @transform_3, window_bounds = array<i64: 8, 8>}, {pipeline_mode = #tpu.pipeline_mode<synchronous>, transform_indices = @transform_4, window_bounds = array<i64: 32, 128>}, {pipeline_mode = #tpu.pipeline_mode<synchronous>, transform_indices = @transform_5, window_bounds = array<i64: 128, 128>}, {pipeline_mode = #tpu.pipeline_mode<synchronous>, transform_indices = @transform_6, window_bounds = array<i64: 128, 128>}, {pipeline_mode = #tpu.pipeline_mode<synchronous>, transform_indices = @transform_7, window_bounds = array<i64: 128, 128>}, {pipeline_mode = #tpu.pipeline_mode<synchronous>, transform_indices = @transform_8, window_bounds = array<i64: 8, 128>}, {pipeline_mode = #tpu.pipeline_mode<synchronous>, transform_indices = @transform_9, window_bounds = array<i64: 2, 128>}, {pipeline_mode = #tpu.pipeline_mode<synchronous>, transform_indices = @transform_10, window_bounds = array<i64: 128, 32>}, {pipeline_mode = #tpu.pipeline_mode<synchronous>, transform_indices = @transform_11, window_bounds = array<i64: 3, 32>}, {pipeline_mode = #tpu.pipeline_mode<synchronous>, transform_indices = @transform_12, window_bounds = array<i64: 128, 8>}, {transform_indices = @transform_13, window_bounds = array<i64: 8, 32>}, {transform_indices = @transform_14, window_bounds = array<i64: 8, 8>}]} {
    %c0 = arith.constant 0 : index
    %c0_0 = arith.constant 0 : index
    %0 = vector.load %arg1[%c0, %c0_0] : memref<8x32xf32, #tpu.memory_space<vmem>>, vector<8x32xf32>
    %1 = arith.truncf %0 : vector<8x32xf32> to vector<8x32xbf16>
    %c0_1 = arith.constant 0 : index
    %c0_2 = arith.constant 0 : index
    %2 = vector.load %arg5[%c0_1, %c0_2] : memref<32x128xbf16, #tpu.memory_space<vmem>>, vector<32x128xbf16>
    %cst = arith.constant dense<0.000000e+00> : vector<8x128xf32>
    %3 = tpu.matmul %1, %2, %cst {dimension_numbers = #tpu.dot_dimension_numbers<[1], [0], [0], [1], [0, 0, 1, 1], [], []>} : vector<8x32xbf16>, vector<32x128xbf16>, vector<8x128xf32> -> vector<8x128xf32>
    %c0_3 = arith.constant 0 : index
    %c0_4 = arith.constant 0 : index
    %4 = vector.load %arg2[%c0_3, %c0_4] : memref<8x128xbf16, #tpu.memory_space<vmem>>, vector<8x128xbf16>
    %c0_5 = arith.constant 0 : index
    %c0_6 = arith.constant 0 : index
    %5 = vector.load %arg6[%c0_5, %c0_6] : memref<128x128xbf16, #tpu.memory_space<vmem>>, vector<128x128xbf16>
    %cst_7 = arith.constant dense<0.000000e+00> : vector<8x128xf32>
    %6 = tpu.matmul %4, %5, %cst_7 {dimension_numbers = #tpu.dot_dimension_numbers<[1], [0], [0], [1], [0, 0, 1, 1], [], []>} : vector<8x128xbf16>, vector<128x128xbf16>, vector<8x128xf32> -> vector<8x128xf32>
    %c0_8 = arith.constant 0 : index
    %c0_9 = arith.constant 0 : index
    %7 = vector.load %arg3[%c0_8, %c0_9] : memref<8x128xbf16, #tpu.memory_space<vmem>>, vector<8x128xbf16>
    %c0_10 = arith.constant 0 : index
    %c0_11 = arith.constant 0 : index
    %8 = vector.load %arg7[%c0_10, %c0_11] : memref<128x128xbf16, #tpu.memory_space<vmem>>, vector<128x128xbf16>
    %cst_12 = arith.constant dense<0.000000e+00> : vector<8x128xf32>
    %9 = tpu.matmul %7, %8, %cst_12 {dimension_numbers = #tpu.dot_dimension_numbers<[1], [0], [0], [1], [0, 0, 1, 1], [], []>} : vector<8x128xbf16>, vector<128x128xbf16>, vector<8x128xf32> -> vector<8x128xf32>
    %10 = arith.mulf %3, %6 : vector<8x128xf32>
    %11 = arith.truncf %10 : vector<8x128xf32> to vector<8x128xbf16>
    %c0_13 = arith.constant 0 : index
    %c0_14 = arith.constant 0 : index
    %12 = vector.load %arg8[%c0_13, %c0_14] : memref<128x128xbf16, #tpu.memory_space<vmem>>, vector<128x128xbf16>
    %cst_15 = arith.constant dense<0.000000e+00> : vector<8x128xf32>
    %13 = tpu.matmul %11, %12, %cst_15 {dimension_numbers = #tpu.dot_dimension_numbers<[1], [0], [0], [1], [0, 0, 1, 1], [], []>} : vector<8x128xbf16>, vector<128x128xbf16>, vector<8x128xf32> -> vector<8x128xf32>
    %c0_16 = arith.constant 0 : index
    %c0_17 = arith.constant 0 : index
    %14 = vector.load %arg4[%c0_16, %c0_17] : memref<8x8xf32, #tpu.memory_space<vmem>>, vector<8x8xf32>
    %c0_18 = arith.constant 0 : index
    %c0_19 = arith.constant 0 : index
    %15 = vector.load %arg9[%c0_18, %c0_19] : memref<8x128xf32, #tpu.memory_space<vmem>>, vector<8x128xf32>
    %cst_20 = arith.constant dense<0.000000e+00> : vector<8x128xf32>
    %16 = tpu.matmul %14, %15, %cst_20 {dimension_numbers = #tpu.dot_dimension_numbers<[1], [0], [0], [1], [0, 0, 1, 1], [], []>} : vector<8x8xf32>, vector<8x128xf32>, vector<8x128xf32> -> vector<8x128xf32>
    %17 = arith.minimumf %13, %16 : vector<8x128xf32>
    %18 = vector.extract_strided_slice %17 {offsets = [0, 0], sizes = [8, 64], strides = [1, 1]} : vector<8x128xf32> to vector<8x64xf32>
    %cst_21 = arith.constant dense<0xFF800000> : vector<8xf32>
    %19 = vector.multi_reduction <maximumf>, %18, %cst_21 [1] : vector<8x64xf32> to vector<8xf32>
    %20 = vector.shape_cast %19 : vector<8xf32> to vector<8x1xf32>
    %21 = vector.extract_strided_slice %17 {offsets = [0, 64], sizes = [8, 64], strides = [1, 1]} : vector<8x128xf32> to vector<8x64xf32>
    %cst_22 = arith.constant dense<0xFF800000> : vector<8xf32>
    %22 = vector.multi_reduction <maximumf>, %21, %cst_22 [1] : vector<8x64xf32> to vector<8xf32>
    %23 = vector.shape_cast %22 : vector<8xf32> to vector<8x1xf32>
    %24 = tpu.concatenate %20, %23 in 1 : vector<8x1xf32>, vector<8x1xf32> -> vector<8x2xf32>
    %c0_23 = arith.constant 0 : index
    %c0_24 = arith.constant 0 : index
    %25 = vector.load %arg10[%c0_23, %c0_24] : memref<2x128xf32, #tpu.memory_space<vmem>>, vector<2x128xf32>
    %cst_25 = arith.constant dense<0.000000e+00> : vector<8x128xf32>
    %26 = tpu.matmul %24, %25, %cst_25 {dimension_numbers = #tpu.dot_dimension_numbers<[1], [0], [0], [1], [0, 0, 1, 1], [], []>} : vector<8x2xf32>, vector<2x128xf32>, vector<8x128xf32> -> vector<8x128xf32>
    %27 = arith.subf %17, %26 : vector<8x128xf32>
    %28 = math.exp %27 : vector<8x128xf32>
    %29 = vector.extract_strided_slice %28 {offsets = [0, 0], sizes = [8, 64], strides = [1, 1]} : vector<8x128xf32> to vector<8x64xf32>
    %cst_26 = arith.constant dense<0.000000e+00> : vector<8xf32>
    %30 = vector.multi_reduction <add>, %29, %cst_26 [1] : vector<8x64xf32> to vector<8xf32>
    %31 = vector.shape_cast %30 : vector<8xf32> to vector<8x1xf32>
    %32 = vector.extract_strided_slice %28 {offsets = [0, 64], sizes = [8, 64], strides = [1, 1]} : vector<8x128xf32> to vector<8x64xf32>
    %cst_27 = arith.constant dense<0.000000e+00> : vector<8xf32>
    %33 = vector.multi_reduction <add>, %32, %cst_27 [1] : vector<8x64xf32> to vector<8xf32>
    %34 = vector.shape_cast %33 : vector<8xf32> to vector<8x1xf32>
    %35 = tpu.concatenate %31, %34 in 1 : vector<8x1xf32>, vector<8x1xf32> -> vector<8x2xf32>
    %c0_28 = arith.constant 0 : index
    %c0_29 = arith.constant 0 : index
    %36 = vector.load %arg10[%c0_28, %c0_29] : memref<2x128xf32, #tpu.memory_space<vmem>>, vector<2x128xf32>
    %cst_30 = arith.constant dense<0.000000e+00> : vector<8x128xf32>
    %37 = tpu.matmul %35, %36, %cst_30 {dimension_numbers = #tpu.dot_dimension_numbers<[1], [0], [0], [1], [0, 0, 1, 1], [], []>} : vector<8x2xf32>, vector<2x128xf32>, vector<8x128xf32> -> vector<8x128xf32>
    %38 = tpu.reciprocal %37 {approx = true} : vector<8x128xf32> -> vector<8x128xf32>
    %39 = arith.mulf %28, %38 : vector<8x128xf32>
    %40 = arith.truncf %39 : vector<8x128xf32> to vector<8x128xbf16>
    %c0_31 = arith.constant 0 : index
    %c0_32 = arith.constant 0 : index
    %41 = vector.load %arg13[%c0_31, %c0_32] : memref<128x8xbf16, #tpu.memory_space<vmem>>, vector<128x8xbf16>
    %cst_33 = arith.constant dense<0.000000e+00> : vector<8x8xf32>
    %42 = tpu.matmul %40, %41, %cst_33 {dimension_numbers = #tpu.dot_dimension_numbers<[1], [0], [0], [1], [0, 0, 1, 1], [], []>} : vector<8x128xbf16>, vector<128x8xbf16>, vector<8x8xf32> -> vector<8x8xf32>
    %c0_34 = arith.constant 0 : index
    %c0_35 = arith.constant 0 : index
    %43 = vector.load %arg15[%c0_34, %c0_35] : memref<8x8xf32, #tpu.memory_space<vmem>>, vector<8x8xf32>
    tpu.vector_store %arg15[%c0_34, %c0_35], %42 {strides = array<i32>} : memref<8x8xf32, #tpu.memory_space<vmem>>, vector<8x8xf32>,
    %44 = arith.mulf %39, %9 : vector<8x128xf32>
    %45 = arith.truncf %44 : vector<8x128xf32> to vector<8x128xbf16>
    %c0_36 = arith.constant 0 : index
    %c0_37 = arith.constant 0 : index
    %46 = vector.load %arg11[%c0_36, %c0_37] : memref<128x32xbf16, #tpu.memory_space<vmem>>, vector<128x32xbf16>
    %cst_38 = arith.constant dense<0.000000e+00> : vector<8x32xf32>
    %47 = tpu.matmul %45, %46, %cst_38 {dimension_numbers = #tpu.dot_dimension_numbers<[1], [0], [0], [1], [0, 0, 1, 1], [], []>} : vector<8x128xbf16>, vector<128x32xbf16>, vector<8x32xf32> -> vector<8x32xf32>
    %c0_39 = arith.constant 0 : index
    %c0_40 = arith.constant 0 : index
    %48 = vector.load %arg12[%c0_39, %c0_40] : memref<3x32xf32, #tpu.memory_space<vmem>>, vector<3x32xf32>
    %49 = vector.extract_strided_slice %48 {offsets = [0, 0], sizes = [1, 32], strides = [1, 1]} : vector<3x32xf32> to vector<1x32xf32>
    %50 = vector.broadcast %49 : vector<1x32xf32> to vector<8x32xf32>
    %51 = arith.addf %47, %50 : vector<8x32xf32>
    %52 = arith.addf %51, %0 : vector<8x32xf32>
    %cst_41 = arith.constant dense<0.000000e+00> : vector<8xf32>
    %53 = vector.multi_reduction <add>, %52, %cst_41 [1] : vector<8x32xf32> to vector<8xf32>
    %54 = vector.shape_cast %53 : vector<8xf32> to vector<8x1xf32>
    %cst_42 = arith.constant 3.200000e+01 : f32
    %55 = vector.broadcast %cst_42 : f32 to vector<8x1xf32>
    %56 = arith.divf %54, %55 : vector<8x1xf32>
    %57 = vector.broadcast %56 : vector<8x1xf32> to vector<8x32xf32>
    %58 = arith.subf %52, %57 : vector<8x32xf32>
    %59 = arith.mulf %58, %58 : vector<8x32xf32>
    %cst_43 = arith.constant dense<0.000000e+00> : vector<8xf32>
    %60 = vector.multi_reduction <add>, %59, %cst_43 [1] : vector<8x32xf32> to vector<8xf32>
    %61 = vector.shape_cast %60 : vector<8xf32> to vector<8x1xf32>
    %cst_44 = arith.constant 3.200000e+01 : f32
    %62 = vector.broadcast %cst_44 : f32 to vector<8x1xf32>
    %63 = arith.divf %61, %62 : vector<8x1xf32>
    %64 = vector.broadcast %56 : vector<8x1xf32> to vector<8x32xf32>
    %65 = arith.subf %52, %64 : vector<8x32xf32>
    %cst_45 = arith.constant 9.99999974E-6 : f32
    %66 = vector.broadcast %cst_45 : f32 to vector<8x1xf32>
    %67 = arith.addf %63, %66 : vector<8x1xf32>
    %68 = math.rsqrt %67 : vector<8x1xf32>
    %69 = vector.broadcast %68 : vector<8x1xf32> to vector<8x32xf32>
    %70 = arith.mulf %65, %69 : vector<8x32xf32>
    %71 = vector.extract_strided_slice %48 {offsets = [1, 0], sizes = [1, 32], strides = [1, 1]} : vector<3x32xf32> to vector<1x32xf32>
    %72 = vector.broadcast %71 : vector<1x32xf32> to vector<8x32xf32>
    %73 = arith.mulf %70, %72 : vector<8x32xf32>
    %74 = vector.extract_strided_slice %48 {offsets = [2, 0], sizes = [1, 32], strides = [1, 1]} : vector<3x32xf32> to vector<1x32xf32>
    %75 = vector.broadcast %74 : vector<1x32xf32> to vector<8x32xf32>
    %76 = arith.addf %73, %75 : vector<8x32xf32>
    %c0_46 = arith.constant 0 : index
    %c0_47 = arith.constant 0 : index
    %77 = vector.load %arg14[%c0_46, %c0_47] : memref<8x32xf32, #tpu.memory_space<vmem>>, vector<8x32xf32>
    tpu.vector_store %arg14[%c0_46, %c0_47], %76 {strides = array<i32>} : memref<8x32xf32, #tpu.memory_space<vmem>>, vector<8x32xf32>,
    return
  }
  func.func @transform_0(%arg0: i32) -> (i32, i32) {
    %c0_i32 = arith.constant 0 : i32
    %c0_i32_0 = arith.constant 0 : i32
    return %arg0, %c0_i32 : i32, i32
  }
  func.func @transform_1(%arg0: i32) -> (i32, i32) {
    %c0_i32 = arith.constant 0 : i32
    %c0_i32_0 = arith.constant 0 : i32
    return %arg0, %c0_i32 : i32, i32
  }
  func.func @transform_2(%arg0: i32) -> (i32, i32) {
    %c0_i32 = arith.constant 0 : i32
    %c0_i32_0 = arith.constant 0 : i32
    return %arg0, %c0_i32 : i32, i32
  }
  func.func @transform_3(%arg0: i32) -> (i32, i32) {
    %c0_i32 = arith.constant 0 : i32
    %c0_i32_0 = arith.constant 0 : i32
    return %arg0, %c0_i32 : i32, i32
  }
  func.func @transform_4(%arg0: i32) -> (i32, i32) {
    %c0_i32 = arith.constant 0 : i32
    %c0_i32_0 = arith.constant 0 : i32
    %c0_i32_1 = arith.constant 0 : i32
    return %c0_i32, %c0_i32_0 : i32, i32
  }
  func.func @transform_5(%arg0: i32) -> (i32, i32) {
    %c0_i32 = arith.constant 0 : i32
    %c0_i32_0 = arith.constant 0 : i32
    %c0_i32_1 = arith.constant 0 : i32
    return %c0_i32, %c0_i32_0 : i32, i32
  }
  func.func @transform_6(%arg0: i32) -> (i32, i32) {
    %c0_i32 = arith.constant 0 : i32
    %c0_i32_0 = arith.constant 0 : i32
    %c0_i32_1 = arith.constant 0 : i32
    return %c0_i32, %c0_i32_0 : i32, i32
  }
  func.func @transform_7(%arg0: i32) -> (i32, i32) {
    %c0_i32 = arith.constant 0 : i32
    %c0_i32_0 = arith.constant 0 : i32
    %c0_i32_1 = arith.constant 0 : i32
    return %c0_i32, %c0_i32_0 : i32, i32
  }
  func.func @transform_8(%arg0: i32) -> (i32, i32) {
    %c0_i32 = arith.constant 0 : i32
    %c0_i32_0 = arith.constant 0 : i32
    %c0_i32_1 = arith.constant 0 : i32
    return %c0_i32, %c0_i32_0 : i32, i32
  }
  func.func @transform_9(%arg0: i32) -> (i32, i32) {
    %c0_i32 = arith.constant 0 : i32
    %c0_i32_0 = arith.constant 0 : i32
    %c0_i32_1 = arith.constant 0 : i32
    return %c0_i32, %c0_i32_0 : i32, i32
  }
  func.func @transform_10(%arg0: i32) -> (i32, i32) {
    %c0_i32 = arith.constant 0 : i32
    %c0_i32_0 = arith.constant 0 : i32
    %c0_i32_1 = arith.constant 0 : i32
    return %c0_i32, %c0_i32_0 : i32, i32
  }
  func.func @transform_11(%arg0: i32) -> (i32, i32) {
    %c0_i32 = arith.constant 0 : i32
    %c0_i32_0 = arith.constant 0 : i32
    %c0_i32_1 = arith.constant 0 : i32
    return %c0_i32, %c0_i32_0 : i32, i32
  }
  func.func @transform_12(%arg0: i32) -> (i32, i32) {
    %c0_i32 = arith.constant 0 : i32
    %c0_i32_0 = arith.constant 0 : i32
    %c0_i32_1 = arith.constant 0 : i32
    return %c0_i32, %c0_i32_0 : i32, i32
  }
  func.func @transform_13(%arg0: i32) -> (i32, i32) {
    %c0_i32 = arith.constant 0 : i32
    %c0_i32_0 = arith.constant 0 : i32
    return %arg0, %c0_i32 : i32, i32
  }
  func.func @transform_14(%arg0: i32) -> (i32, i32) {
    %c0_i32 = arith.constant 0 : i32
    %c0_i32_0 = arith.constant 0 : i32
    return %arg0, %c0_i32 : i32, i32
  }
}

</mosaic_0001>

<llo_original>
// kernel: tpu_custom_call.1
$region0: #{tpu_custom_call.1}
  #allocation0 [shape = 'u32[]', space=smem, size = 0x4, offset = 0x4, fixed_abs, tag = 'smem constant byte address 0x4 - core index']
  #allocation1 [shape = 'u32[144,128]{1,0:T(1,128)}', space=vmem, size = 0x12000, scoped, tag = 'internal scratch']
  %s0 = inlined_call_operand.hbm [shape: f32[8,32], index: 0, kind: input, shape index: {}]
  %s1 = inlined_call_operand.hbm [shape: bf16[8,128], index: 1, kind: input, shape index: {}]
  %s2 = inlined_call_operand.hbm [shape: bf16[8,128], index: 2, kind: input, shape index: {}]
  %s3 = inlined_call_operand.vmem [shape: f32[8,8], index: 3, kind: input, shape index: {}]
  %s4 = inlined_call_operand.vmem [shape: bf16[32,128], index: 4, kind: input, shape index: {}]
  %s5 = inlined_call_operand.vmem [shape: bf16[128,128], index: 5, kind: input, shape index: {}]
  %s6 = inlined_call_operand.vmem [shape: bf16[128,128], index: 6, kind: input, shape index: {}]
  %s7 = inlined_call_operand.hbm [shape: bf16[128,128], index: 7, kind: input, shape index: {}]
  %s8 = inlined_call_operand.vmem [shape: f32[8,128], index: 8, kind: input, shape index: {}]
  %s9 = inlined_call_operand.hbm [shape: f32[2,128], index: 9, kind: input, shape index: {}]
  %s10 = inlined_call_operand.vmem [shape: bf16[128,32], index: 10, kind: input, shape index: {}]
  %s11 = inlined_call_operand.vmem [shape: f32[3,32], index: 11, kind: input, shape index: {}]
  %s12 = inlined_call_operand.vmem [shape: bf16[128,8], index: 12, kind: input, shape index: {}]
  %s13 = inlined_call_operand.hbm [shape: f32[8,32], index: 13, kind: output, shape index: {0}]
  %s14 = inlined_call_operand.hbm [shape: f32[8,8], index: 14, kind: output, shape index: {1}]
  %15 = xla_tuple %s13, %s14
  %s16 = sld [smem:[#allocation0]]
  $region90: #{tpu_custom_call.1} parent=0
    _
  %s18 = ssub.s32 1, %s16
  %s19 = scalar_select 0, %s18, %s16
  $region1: #{tpu_custom_call.1} parent=0
    #allocation2 [shape = 'u8[4096]{0}', space=vmem, size = 0x1000, scoped, tag = 'input window, operand 0, single buffered']
    #allocation3 [shape = 's32[1]{0}', space=sflag, size = 0x4, scoped, tag = 'scoped memory for tpu_custom_call.1']
    #allocation4 [shape = 's32[1]{0}', space=sflag, size = 0x4, scoped, tag = 'scoped memory for tpu_custom_call.1']
    #allocation5 [shape = 'u8[2048]{0}', space=vmem, size = 0x800, scoped, tag = 'input window, operand 1, single buffered']
    #allocation6 [shape = 's32[1]{0}', space=sflag, size = 0x4, scoped, tag = 'scoped memory for tpu_custom_call.1']
    #allocation7 [shape = 'u8[2048]{0}', space=vmem, size = 0x800, scoped, tag = 'input window, operand 2, single buffered']
    #allocation8 [shape = 'u8[32768]{0}', space=vmem, size = 0x8000, scoped, tag = 'input window, operand 7, single buffered']
    #allocation9 [shape = 's32[1]{0}', space=sflag, size = 0x4, scoped, tag = 'scoped memory for tpu_custom_call.1']
    #allocation10 [shape = 'u8[1024]{0}', space=vmem, size = 0x400, scoped, tag = 'input window, operand 9, single buffered']
    #allocation11 [shape = 'u8[4096]{0}', space=vmem, size = 0x1000, scoped, tag = 'output window, operand 0, single buffered']
    #allocation12 [shape = 'u8[4096]{0}', space=vmem, size = 0x1000, scoped, tag = 'output window, operand 1, single buffered']
    #allocation13 [shape = 's32[1]{0}', space=sflag, size = 0x4, scoped, tag = 'scoped memory for tpu_custom_call.1']
    %20 = vsyncpa [#allocation3], 0
    %21 = vsyncpa [#allocation6], 0
    %22 = vsyncpa [#allocation9], 0
    %23 = vsyncpa [#allocation4], 0
    %24 = vsyncpa [#allocation13], 0
    // Predicated region
    $region2: #{tpu_custom_call.1} parent=1 // pred_check
      _
    $region3: #{tpu_custom_call.1} parent=1 // pred_check_branch
      %26 = sbr.rel (0) target = $region5
    $region4: #{tpu_custom_call.1} parent=1 // pred_region
      %s28 = ssub.s32 128, 128
      %29 = vsyncadd [#allocation3], %s28
      %s31 = sshll.u32 [#allocation2], 4
      %s32 = int_to_ptr.vmem [resolvable:$true] %s31
      %34 = dma.hbm_to_vmem [thread:$0]  %s0, 128, %s32, [#allocation3]
    $region5: #{tpu_custom_call.1} parent=1 // pred_fallthru
      _
    // Predicated region
    $region6: #{tpu_custom_call.1} parent=1 // pred_check
      _
    $region7: #{tpu_custom_call.1} parent=1 // pred_check_branch
      %36 = sbr.rel (0) target = $region9
    $region8: #{tpu_custom_call.1} parent=1 // pred_region
      %s38 = ssub.s32 64, 64
      %39 = vsyncadd [#allocation6], %s38
      %s41 = sshll.u32 [#allocation5], 4
      %s42 = int_to_ptr.vmem [resolvable:$true] %s41
      %44 = dma.hbm_to_vmem [thread:$0]  %s1, 64, %s42, [#allocation6]
    $region9: #{tpu_custom_call.1} parent=1 // pred_fallthru
      _
    // Predicated region
    $region10: #{tpu_custom_call.1} parent=1 // pred_check
      _
    $region11: #{tpu_custom_call.1} parent=1 // pred_check_branch
      %46 = sbr.rel (0) target = $region13
    $region12: #{tpu_custom_call.1} parent=1 // pred_region
      %s48 = ssub.s32 64, 64
      %49 = vsyncadd [#allocation6], %s48
      %s51 = sshll.u32 [#allocation7], 4
      %s52 = int_to_ptr.vmem [resolvable:$true] %s51
      %54 = dma.hbm_to_vmem [thread:$0]  %s2, 64, %s52, [#allocation6]
    $region13: #{tpu_custom_call.1} parent=1 // pred_fallthru
      _
    // Predicated region
    $region14: #{tpu_custom_call.1} parent=1 // pred_check
      _
    $region15: #{tpu_custom_call.1} parent=1 // pred_check_branch
      %56 = sbr.rel (0) target = $region17
    $region16: #{tpu_custom_call.1} parent=1 // pred_region
      _
    $region17: #{tpu_custom_call.1} parent=1 // pred_fallthru
      _
    // Predicated region
    $region18: #{tpu_custom_call.1} parent=1 // pred_check
      _
    $region19: #{tpu_custom_call.1} parent=1 // pred_check_branch
      %58 = sbr.rel (0) target = $region21
    $region20: #{tpu_custom_call.1} parent=1 // pred_region
      _
    $region21: #{tpu_custom_call.1} parent=1 // pred_fallthru
      _
    // Predicated region
    $region22: #{tpu_custom_call.1} parent=1 // pred_check
      _
    $region23: #{tpu_custom_call.1} parent=1 // pred_check_branch
      %60 = sbr.rel (0) target = $region25
    $region24: #{tpu_custom_call.1} parent=1 // pred_region
      _
    $region25: #{tpu_custom_call.1} parent=1 // pred_fallthru
      _
    // Predicated region
    $region26: #{tpu_custom_call.1} parent=1 // pred_check
      _
    $region27: #{tpu_custom_call.1} parent=1 // pred_check_branch
      %62 = sbr.rel (0) target = $region29
    $region28: #{tpu_custom_call.1} parent=1 // pred_region
      _
    $region29: #{tpu_custom_call.1} parent=1 // pred_fallthru
      _
    // Predicated region
    $region30: #{tpu_custom_call.1} parent=1 // pred_check
      _
    $region31: #{tpu_custom_call.1} parent=1 // pred_check_branch
      %64 = sbr.rel (0) target = $region33
    $region32: #{tpu_custom_call.1} parent=1 // pred_region
      %s66 = ssub.s32 1024, 1024
      %67 = vsyncadd [#allocation9], %s66
      %s68 = sshll.u32 [#allocation8], 4
      %s69 = int_to_ptr.vmem [resolvable:$true] %s68
      %74 = dma.hbm_to_vmem [thread:$0]  %s7, 1024, %s69, [#allocation9], 64, 64, 4
    $region33: #{tpu_custom_call.1} parent=1 // pred_fallthru
      _
    // Predicated region
    $region34: #{tpu_custom_call.1} parent=1 // pred_check
      _
    $region35: #{tpu_custom_call.1} parent=1 // pred_check_branch
      %76 = sbr.rel (0) target = $region37
    $region36: #{tpu_custom_call.1} parent=1 // pred_region
      _
    $region37: #{tpu_custom_call.1} parent=1 // pred_fallthru
      _
    // Predicated region
    $region38: #{tpu_custom_call.1} parent=1 // pred_check
      _
    $region39: #{tpu_custom_call.1} parent=1 // pred_check_branch
      %78 = sbr.rel (0) target = $region41
    $region40: #{tpu_custom_call.1} parent=1 // pred_region
      %s80 = ssub.s32 32, 32
      %81 = vsyncadd [#allocation9], %s80
      %s83 = sshll.u32 [#allocation10], 4
      %s84 = int_to_ptr.vmem [resolvable:$true] %s83
      %86 = dma.hbm_to_vmem [thread:$0]  %s9, 32, %s84, [#allocation9]
    $region41: #{tpu_custom_call.1} parent=1 // pred_fallthru
      _
    // Predicated region
    $region42: #{tpu_custom_call.1} parent=1 // pred_check
      _
    $region43: #{tpu_custom_call.1} parent=1 // pred_check_branch
      %88 = sbr.rel (0) target = $region45
    $region44: #{tpu_custom_call.1} parent=1 // pred_region
      _
    $region45: #{tpu_custom_call.1} parent=1 // pred_fallthru
      _
    // Predicated region
    $region46: #{tpu_custom_call.1} parent=1 // pred_check
      _
    $region47: #{tpu_custom_call.1} parent=1 // pred_check_branch
      %90 = sbr.rel (0) target = $region49
    $region48: #{tpu_custom_call.1} parent=1 // pred_region
      _
    $region49: #{tpu_custom_call.1} parent=1 // pred_fallthru
      _
    // Predicated region
    $region50: #{tpu_custom_call.1} parent=1 // pred_check
      _
    $region51: #{tpu_custom_call.1} parent=1 // pred_check_branch
      %92 = sbr.rel (0) target = $region53
    $region52: #{tpu_custom_call.1} parent=1 // pred_region
      _
    $region53: #{tpu_custom_call.1} parent=1 // pred_fallthru
      _
    // Predicated region
    $region54: #{tpu_custom_call.1} parent=1 // pred_check
      _
    $region55: #{tpu_custom_call.1} parent=1 // pred_check_branch
      %94 = sbr.rel (0) target = $region57
    $region56: #{tpu_custom_call.1} parent=1 // pred_region
      %95 = dma.done [#allocation3], 128
    $region57: #{tpu_custom_call.1} parent=1 // pred_fallthru
      _
    // Predicated region
    $region58: #{tpu_custom_call.1} parent=1 // pred_check
      _
    $region59: #{tpu_custom_call.1} parent=1 // pred_check_branch
      %97 = sbr.rel (0) target = $region61
    $region60: #{tpu_custom_call.1} parent=1 // pred_region
      %98 = dma.done [#allocation6], 64
    $region61: #{tpu_custom_call.1} parent=1 // pred_fallthru
      _
    // Predicated region
    $region62: #{tpu_custom_call.1} parent=1 // pred_check
      _
    $region63: #{tpu_custom_call.1} parent=1 // pred_check_branch
      %100 = sbr.rel (0) target = $region65
    $region64: #{tpu_custom_call.1} parent=1 // pred_region
      %101 = dma.done [#allocation6], 64
    $region65: #{tpu_custom_call.1} parent=1 // pred_fallthru
      _
    // Predicated region
    $region66: #{tpu_custom_call.1} parent=1 // pred_check
      _
    $region67: #{tpu_custom_call.1} parent=1 // pred_check_branch
      %103 = sbr.rel (0) target = $region69
    $region68: #{tpu_custom_call.1} parent=1 // pred_region
      %104 = dma.done [#allocation9], 1024
    $region69: #{tpu_custom_call.1} parent=1 // pred_fallthru
      _
    // Predicated region
    $region70: #{tpu_custom_call.1} parent=1 // pred_check
      _
    $region71: #{tpu_custom_call.1} parent=1 // pred_check_branch
      %106 = sbr.rel (0) target = $region73
    $region72: #{tpu_custom_call.1} parent=1 // pred_region
      %107 = dma.done [#allocation9], 32
    $region73: #{tpu_custom_call.1} parent=1 // pred_fallthru
      _
    %v109 = vld [vmem:[#allocation2] sm:$0xff]
    %v110 = vpack.c.bf16 %v109, %v109
    %v111 = vld [vmem:[%s4] sm:$0xf]
    %v112 = vld [vmem:[%s4 + $0x4] sm:$0xf]
    %v113 = vld [vmem:[%s4 + $0x8] sm:$0xf]
    %v114 = vld [vmem:[%s4 + $0xc] sm:$0xf]
    %v119 = vunpack.c.l.b16 %v111
    %v120 = vunpack.c.l.b16 %v112
    %v121 = vunpack.c.l.b16 %v113
    %v122 = vunpack.c.l.b16 %v114
    %v123 = vpack.c.b16 %v120, %v119
    %v124 = vpack.c.b16 %v122, %v121
    %vm127 = vcmask 261120
    %v129 = vsel %vm127, %v110, 0
    %131 = vmatprep.subr.bf16.mxu0 0
    %132 = vmatpush1.bf16.msra.mxu0 %v123
    %133 = vmatprep.subr.bf16.mxu0 0
    %134 = vmatpush1.bf16.msra.mxu0 %v124
    %135 = vmatprep.subr.bf16.mxu0 0
    %136 = vmatpush1.bf16.msra.mxu0 0
    %137 = vmatprep.subr.bf16.mxu0 0
    %138 = vmatpush1.bf16.msra.mxu0 0
    %139 = vmatprep.subr.bf16.mxu0 0
    %140 = vmatpush1.bf16.msra.mxu0 0
    %141 = vmatprep.subr.bf16.mxu0 0
    %142 = vmatpush1.bf16.msra.mxu0 0
    %143 = vmatprep.subr.bf16.mxu0 0
    %144 = vmatpush1.bf16.msra.mxu0 0
    %145 = vmatprep.subr.bf16.mxu0 0
    %146 = vmatpush1.bf16.msra.mxu0 0
    %147 = vmatprep.subr.bf16.mxu0 0
    %148 = vmatpush1.bf16.msra.mxu0 0
    %149 = vmatprep.subr.bf16.mxu0 0
    %150 = vmatpush1.bf16.msra.mxu0 0
    %151 = vmatprep.subr.bf16.mxu0 0
    %152 = vmatpush1.bf16.msra.mxu0 0
    %153 = vmatprep.subr.bf16.mxu0 0
    %154 = vmatpush1.bf16.msra.mxu0 0
    %155 = vmatprep.subr.bf16.mxu0 0
    %156 = vmatpush1.bf16.msra.mxu0 0
    %157 = vmatprep.subr.bf16.mxu0 0
    %158 = vmatpush1.bf16.msra.mxu0 0
    %159 = vmatprep.subr.bf16.mxu0 0
    %160 = vmatpush1.bf16.msra.mxu0 0
    %161 = vmatprep.subr.bf16.mxu0 0
    %162 = vmatpush1.bf16.msra.mxu0 0
    %163 = vmatprep.mubr.bf16.mxu0 0
    %164 = vmatmul.mubr.bf16.gmra.mrb[0].mxu0 %v129
    %v165 = vpop.f32.mrb[0].mxu0
    %v166 = vadd.f32 0.0, %v165
    %v167 = vpop.f32.mrb[0].mxu0
    %v168 = vpop.f32.mrb[0].mxu0
    %v169 = vpop.f32.mrb[0].mxu0
    %170 = vdwg.mxu0
    %v171 = vld [vmem:[#allocation5] sm:$0xf]
    %v172 = vld [vmem:[%s5] sm:$0xf]
    %v173 = vld [vmem:[%s5 + $0x4] sm:$0xf]
    %v174 = vld [vmem:[%s5 + $0x8] sm:$0xf]
    %v175 = vld [vmem:[%s5 + $0xc] sm:$0xf]
    %v176 = vld [vmem:[%s5 + $0x10] sm:$0xf]
    %v177 = vld [vmem:[%s5 + $0x14] sm:$0xf]
    %v178 = vld [vmem:[%s5 + $0x18] sm:$0xf]
    %v179 = vld [vmem:[%s5 + $0x1c] sm:$0xf]
    %v180 = vld [vmem:[%s5 + $0x20] sm:$0xf]
    %v181 = vld [vmem:[%s5 + $0x24] sm:$0xf]
    %v182 = vld [vmem:[%s5 + $0x28] sm:$0xf]
    %v183 = vld [vmem:[%s5 + $0x2c] sm:$0xf]
    %v184 = vld [vmem:[%s5 + $0x30] sm:$0xf]
    %v185 = vld [vmem:[%s5 + $0x34] sm:$0xf]
    %v186 = vld [vmem:[%s5 + $0x38] sm:$0xf]
    %v187 = vld [vmem:[%s5 + $0x3c] sm:$0xf]
    %v204 = vunpack.c.l.b16 %v172
    %v205 = vunpack.c.l.b16 %v173
    %v206 = vunpack.c.l.b16 %v174
    %v207 = vunpack.c.l.b16 %v175
    %v208 = vunpack.c.l.b16 %v176
    %v209 = vunpack.c.l.b16 %v177
    %v210 = vunpack.c.l.b16 %v178
    %v211 = vunpack.c.l.b16 %v179
    %v212 = vunpack.c.l.b16 %v180
    %v213 = vunpack.c.l.b16 %v181
    %v214 = vunpack.c.l.b16 %v182
    %v215 = vunpack.c.l.b16 %v183
    %v216 = vunpack.c.l.b16 %v184
    %v217 = vunpack.c.l.b16 %v185
    %v218 = vunpack.c.l.b16 %v186
    %v219 = vunpack.c.l.b16 %v187
    %v220 = vpack.c.b16 %v205, %v204
    %v221 = vpack.c.b16 %v207, %v206
    %v222 = vpack.c.b16 %v209, %v208
    %v223 = vpack.c.b16 %v211, %v210
    %v224 = vpack.c.b16 %v213, %v212
    %v225 = vpack.c.b16 %v215, %v214
    %v226 = vpack.c.b16 %v217, %v216
    %v227 = vpack.c.b16 %v219, %v218
    %236 = vmatprep.subr.bf16.mxu0 0
    %237 = vmatpush1.bf16.msra.mxu0 %v220
    %238 = vmatprep.subr.bf16.mxu0 0
    %239 = vmatpush1.bf16.msra.mxu0 %v221
    %240 = vmatprep.subr.bf16.mxu0 0
    %241 = vmatpush1.bf16.msra.mxu0 %v222
    %242 = vmatprep.subr.bf16.mxu0 0
    %243 = vmatpush1.bf16.msra.mxu0 %v223
    %244 = vmatprep.subr.bf16.mxu0 0
    %245 = vmatpush1.bf16.msra.mxu0 %v224
    %246 = vmatprep.subr.bf16.mxu0 0
    %247 = vmatpush1.bf16.msra.mxu0 %v225
    %248 = vmatprep.subr.bf16.mxu0 0
    %249 = vmatpush1.bf16.msra.mxu0 %v226
    %250 = vmatprep.subr.bf16.mxu0 0
    %251 = vmatpush1.bf16.msra.mxu0 %v227
    %252 = vmatprep.subr.bf16.mxu0 0
    %253 = vmatpush1.bf16.msra.mxu0 0
    %254 = vmatprep.subr.bf16.mxu0 0
    %255 = vmatpush1.bf16.msra.mxu0 0
    %256 = vmatprep.subr.bf16.mxu0 0
    %257 = vmatpush1.bf16.msra.mxu0 0
    %258 = vmatprep.subr.bf16.mxu0 0
    %259 = vmatpush1.bf16.msra.mxu0 0
    %260 = vmatprep.subr.bf16.mxu0 0
    %261 = vmatpush1.bf16.msra.mxu0 0
    %262 = vmatprep.subr.bf16.mxu0 0
    %263 = vmatpush1.bf16.msra.mxu0 0
    %264 = vmatprep.subr.bf16.mxu0 0
    %265 = vmatpush1.bf16.msra.mxu0 0
    %266 = vmatprep.subr.bf16.mxu0 0
    %267 = vmatpush1.bf16.msra.mxu0 0
    %268 = vmatprep.mubr.bf16.mxu0 0
    %269 = vmatmul.mubr.bf16.gmra.mrb[0].mxu0 %v171
    %v270 = vpop.f32.mrb[0].mxu0
    %v271 = vadd.f32 0.0, %v270
    %v272 = vpop.f32.mrb[0].mxu0
    %v273 = vpop.f32.mrb[0].mxu0
    %v274 = vpop.f32.mrb[0].mxu0
    %275 = vdwg.mxu0
    %v276 = vld [vmem:[#allocation7] sm:$0xf]
    %v277 = vld [vmem:[%s6] sm:$0xf]
    %v278 = vld [vmem:[%s6 + $0x4] sm:$0xf]
    %v279 = vld [vmem:[%s6 + $0x8] sm:$0xf]
    %v280 = vld [vmem:[%s6 + $0xc] sm:$0xf]
    %v281 = vld [vmem:[%s6 + $0x10] sm:$0xf]
    %v282 = vld [vmem:[%s6 + $0x14] sm:$0xf]
    %v283 = vld [vmem:[%s6 + $0x18] sm:$0xf]
    %v284 = vld [vmem:[%s6 + $0x1c] sm:$0xf]
    %v285 = vld [vmem:[%s6 + $0x20] sm:$0xf]
    %v286 = vld [vmem:[%s6 + $0x24] sm:$0xf]
    %v287 = vld [vmem:[%s6 + $0x28] sm:$0xf]
    %v288 = vld [vmem:[%s6 + $0x2c] sm:$0xf]
    %v289 = vld [vmem:[%s6 + $0x30] sm:$0xf]
    %v290 = vld [vmem:[%s6 + $0x34] sm:$0xf]
    %v291 = vld [vmem:[%s6 + $0x38] sm:$0xf]
    %v292 = vld [vmem:[%s6 + $0x3c] sm:$0xf]
    %v309 = vunpack.c.l.b16 %v277
    %v310 = vunpack.c.l.b16 %v278
    %v311 = vunpack.c.l.b16 %v279
    %v312 = vunpack.c.l.b16 %v280
    %v313 = vunpack.c.l.b16 %v281
    %v314 = vunpack.c.l.b16 %v282
    %v315 = vunpack.c.l.b16 %v283
    %v316 = vunpack.c.l.b16 %v284
    %v317 = vunpack.c.l.b16 %v285
    %v318 = vunpack.c.l.b16 %v286
    %v319 = vunpack.c.l.b16 %v287
    %v320 = vunpack.c.l.b16 %v288
    %v321 = vunpack.c.l.b16 %v289
    %v322 = vunpack.c.l.b16 %v290
    %v323 = vunpack.c.l.b16 %v291
    %v324 = vunpack.c.l.b16 %v292
    %v325 = vpack.c.b16 %v310, %v309
    %v326 = vpack.c.b16 %v312, %v311
    %v327 = vpack.c.b16 %v314, %v313
    %v328 = vpack.c.b16 %v316, %v315
    %v329 = vpack.c.b16 %v318, %v317
    %v330 = vpack.c.b16 %v320, %v319
    %v331 = vpack.c.b16 %v322, %v321
    %v332 = vpack.c.b16 %v324, %v323
    %341 = vmatprep.subr.bf16.mxu0 0
    %342 = vmatpush1.bf16.msra.mxu0 %v325
    %343 = vmatprep.subr.bf16.mxu0 0
    %344 = vmatpush1.bf16.msra.mxu0 %v326
    %345 = vmatprep.subr.bf16.mxu0 0
    %346 = vmatpush1.bf16.msra.mxu0 %v327
    %347 = vmatprep.subr.bf16.mxu0 0
    %348 = vmatpush1.bf16.msra.mxu0 %v328
    %349 = vmatprep.subr.bf16.mxu0 0
    %350 = vmatpush1.bf16.msra.mxu0 %v329
    %351 = vmatprep.subr.bf16.mxu0 0
    %352 = vmatpush1.bf16.msra.mxu0 %v330
    %353 = vmatprep.subr.bf16.mxu0 0
    %354 = vmatpush1.bf16.msra.mxu0 %v331
    %355 = vmatprep.subr.bf16.mxu0 0
    %356 = vmatpush1.bf16.msra.mxu0 %v332
    %357 = vmatprep.subr.bf16.mxu0 0
    %358 = vmatpush1.bf16.msra.mxu0 0
    %359 = vmatprep.subr.bf16.mxu0 0
    %360 = vmatpush1.bf16.msra.mxu0 0
    %361 = vmatprep.subr.bf16.mxu0 0
    %362 = vmatpush1.bf16.msra.mxu0 0
    %363 = vmatprep.subr.bf16.mxu0 0
    %364 = vmatpush1.bf16.msra.mxu0 0
    %365 = vmatprep.subr.bf16.mxu0 0
    %366 = vmatpush1.bf16.msra.mxu0 0
    %367 = vmatprep.subr.bf16.mxu0 0
    %368 = vmatpush1.bf16.msra.mxu0 0
    %369 = vmatprep.subr.bf16.mxu0 0
    %370 = vmatpush1.bf16.msra.mxu0 0
    %371 = vmatprep.subr.bf16.mxu0 0
    %372 = vmatpush1.bf16.msra.mxu0 0
    %373 = vmatprep.mubr.bf16.mxu0 0
    %374 = vmatmul.mubr.bf16.gmra.mrb[0].mxu0 %v276
    %v375 = vpop.f32.mrb[0].mxu0
    %v376 = vadd.f32 0.0, %v375
    %v377 = vpop.f32.mrb[0].mxu0
    %v378 = vpop.f32.mrb[0].mxu0
    %v379 = vpop.f32.mrb[0].mxu0
    %380 = vdwg.mxu0
    %v381 = vmul.f32 %v166, %v271
    %v382 = vpack.c.bf16 %v381, %v381
    %v383 = vld [vmem:[#allocation8] sm:$0xf]
    %v384 = vld [vmem:[#allocation8 + $0x4] sm:$0xf]
    %v385 = vld [vmem:[#allocation8 + $0x8] sm:$0xf]
    %v386 = vld [vmem:[#allocation8 + $0xc] sm:$0xf]
    %v387 = vld [vmem:[#allocation8 + $0x10] sm:$0xf]
    %v388 = vld [vmem:[#allocation8 + $0x14] sm:$0xf]
    %v389 = vld [vmem:[#allocation8 + $0x18] sm:$0xf]
    %v390 = vld [vmem:[#allocation8 + $0x1c] sm:$0xf]
    %v391 = vld [vmem:[#allocation8 + $0x20] sm:$0xf]
    %v392 = vld [vmem:[#allocation8 + $0x24] sm:$0xf]
    %v393 = vld [vmem:[#allocation8 + $0x28] sm:$0xf]
    %v394 = vld [vmem:[#allocation8 + $0x2c] sm:$0xf]
    %v395 = vld [vmem:[#allocation8 + $0x30] sm:$0xf]
    %v396 = vld [vmem:[#allocation8 + $0x34] sm:$0xf]
    %v397 = vld [vmem:[#allocation8 + $0x38] sm:$0xf]
    %v398 = vld [vmem:[#allocation8 + $0x3c] sm:$0xf]
    %v415 = vunpack.c.l.b16 %v383
    %v416 = vunpack.c.l.b16 %v384
    %v417 = vunpack.c.l.b16 %v385
    %v418 = vunpack.c.l.b16 %v386
    %v419 = vunpack.c.l.b16 %v387
    %v420 = vunpack.c.l.b16 %v388
    %v421 = vunpack.c.l.b16 %v389
    %v422 = vunpack.c.l.b16 %v390
    %v423 = vunpack.c.l.b16 %v391
    %v424 = vunpack.c.l.b16 %v392
    %v425 = vunpack.c.l.b16 %v393
    %v426 = vunpack.c.l.b16 %v394
    %v427 = vunpack.c.l.b16 %v395
    %v428 = vunpack.c.l.b16 %v396
    %v429 = vunpack.c.l.b16 %v397
    %v430 = vunpack.c.l.b16 %v398
    %v431 = vpack.c.b16 %v416, %v415
    %v432 = vpack.c.b16 %v418, %v417
    %v433 = vpack.c.b16 %v420, %v419
    %v434 = vpack.c.b16 %v422, %v421
    %v435 = vpack.c.b16 %v424, %v423
    %v436 = vpack.c.b16 %v426, %v425
    %v437 = vpack.c.b16 %v428, %v427
    %v438 = vpack.c.b16 %v430, %v429
    %447 = vmatprep.subr.bf16.mxu0 0
    %448 = vmatpush1.bf16.msra.mxu0 %v431
    %449 = vmatprep.subr.bf16.mxu0 0
    %450 = vmatpush1.bf16.msra.mxu0 %v432
    %451 = vmatprep.subr.bf16.mxu0 0
    %452 = vmatpush1.bf16.msra.mxu0 %v433
    %453 = vmatprep.subr.bf16.mxu0 0
    %454 = vmatpush1.bf16.msra.mxu0 %v434
    %455 = vmatprep.subr.bf16.mxu0 0
    %456 = vmatpush1.bf16.msra.mxu0 %v435
    %457 = vmatprep.subr.bf16.mxu0 0
    %458 = vmatpush1.bf16.msra.mxu0 %v436
    %459 = vmatprep.subr.bf16.mxu0 0
    %460 = vmatpush1.bf16.msra.mxu0 %v437
    %461 = vmatprep.subr.bf16.mxu0 0
    %462 = vmatpush1.bf16.msra.mxu0 %v438
    %463 = vmatprep.subr.bf16.mxu0 0
    %464 = vmatpush1.bf16.msra.mxu0 0
    %465 = vmatprep.subr.bf16.mxu0 0
    %466 = vmatpush1.bf16.msra.mxu0 0
    %467 = vmatprep.subr.bf16.mxu0 0
    %468 = vmatpush1.bf16.msra.mxu0 0
    %469 = vmatprep.subr.bf16.mxu0 0
    %470 = vmatpush1.bf16.msra.mxu0 0
    %471 = vmatprep.subr.bf16.mxu0 0
    %472 = vmatpush1.bf16.msra.mxu0 0
    %473 = vmatprep.subr.bf16.mxu0 0
    %474 = vmatpush1.bf16.msra.mxu0 0
    %475 = vmatprep.subr.bf16.mxu0 0
    %476 = vmatpush1.bf16.msra.mxu0 0
    %477 = vmatprep.subr.bf16.mxu0 0
    %478 = vmatpush1.bf16.msra.mxu0 0
    %479 = vmatprep.mubr.bf16.mxu0 0
    %480 = vmatmul.mubr.bf16.gmra.mrb[0].mxu0 %v382
    %v481 = vpop.f32.mrb[0].mxu0
    %v482 = vadd.f32 0.0, %v481
    %v483 = vpop.f32.mrb[0].mxu0
    %v484 = vpop.f32.mrb[0].mxu0
    %v485 = vpop.f32.mrb[0].mxu0
    %486 = vdwg.mxu0
    %v487 = vld [vmem:[%s3] sm:$0xff]
    %v488 = vld [vmem:[%s8] sm:$0xff]
    %vm489 = vcmask 64512
    %v491 = vsel %vm489, %v487, 0
    %493 = vmatprep.subr.mxu0 0.0
    %494 = vmatpush1.msra.mxu0 %v488
    %495 = vmatprep.subr.mxu0 0.0
    %496 = vmatpush1.msra.mxu0 0.0
    %497 = vmatprep.subr.mxu0 0.0
    %498 = vmatpush1.msra.mxu0 0.0
    %499 = vmatprep.subr.mxu0 0.0
    %500 = vmatpush1.msra.mxu0 0.0
    %501 = vmatprep.subr.mxu0 0.0
    %502 = vmatpush1.msra.mxu0 0.0
    %503 = vmatprep.subr.mxu0 0.0
    %504 = vmatpush1.msra.mxu0 0.0
    %505 = vmatprep.subr.mxu0 0.0
    %506 = vmatpush1.msra.mxu0 0.0
    %507 = vmatprep.subr.mxu0 0.0
    %508 = vmatpush1.msra.mxu0 0.0
    %509 = vmatprep.subr.mxu0 0.0
    %510 = vmatpush1.msra.mxu0 0.0
    %511 = vmatprep.subr.mxu0 0.0
    %512 = vmatpush1.msra.mxu0 0.0
    %513 = vmatprep.subr.mxu0 0.0
    %514 = vmatpush1.msra.mxu0 0.0
    %515 = vmatprep.subr.mxu0 0.0
    %516 = vmatpush1.msra.mxu0 0.0
    %517 = vmatprep.subr.mxu0 0.0
    %518 = vmatpush1.msra.mxu0 0.0
    %519 = vmatprep.subr.mxu0 0.0
    %520 = vmatpush1.msra.mxu0 0.0
    %521 = vmatprep.subr.mxu0 0.0
    %522 = vmatpush1.msra.mxu0 0.0
    %523 = vmatprep.subr.mxu0 0.0
    %524 = vmatpush1.msra.mxu0 0.0
    %525 = vmatprep.subr.mxu0 0.0
    %526 = vmatpush1.msra.mxu0 0.0
    %527 = vmatprep.subr.mxu0 0.0
    %528 = vmatpush1.msra.mxu0 0.0
    %529 = vmatprep.subr.mxu0 0.0
    %530 = vmatpush1.msra.mxu0 0.0
    %531 = vmatprep.subr.mxu0 0.0
    %532 = vmatpush1.msra.mxu0 0.0
    %533 = vmatprep.subr.mxu0 0.0
    %534 = vmatpush1.msra.mxu0 0.0
    %535 = vmatprep.subr.mxu0 0.0
    %536 = vmatpush1.msra.mxu0 0.0
    %537 = vmatprep.subr.mxu0 0.0
    %538 = vmatpush1.msra.mxu0 0.0
    %539 = vmatprep.subr.mxu0 0.0
    %540 = vmatpush1.msra.mxu0 0.0
    %541 = vmatprep.subr.mxu0 0.0
    %542 = vmatpush1.msra.mxu0 0.0
    %543 = vmatprep.subr.mxu0 0.0
    %544 = vmatpush1.msra.mxu0 0.0
    %545 = vmatprep.subr.mxu0 0.0
    %546 = vmatpush1.msra.mxu0 0.0
    %547 = vmatprep.subr.mxu0 0.0
    %548 = vmatpush1.msra.mxu0 0.0
    %549 = vmatprep.subr.mxu0 0.0
    %550 = vmatpush1.msra.mxu0 0.0
    %551 = vmatprep.subr.mxu0 0.0
    %552 = vmatpush1.msra.mxu0 0.0
    %553 = vmatprep.subr.mxu0 0.0
    %554 = vmatpush1.msra.mxu0 0.0
    %555 = vmatprep.subr.mxu0 0.0
    %556 = vmatpush1.msra.mxu0 0.0
    %557 = vmatprep.mubr.f32.mxu0 0.0
    %558 = vmatmul.mubr.f32.gmra.mrb[0].mxu0 %v491
    %v559 = vpop.f32.mrb[0].mxu0
    %v560 = vadd.f32 0.0, %v559
    %v561 = vpop.f32.mrb[0].mxu0
    %562 = vdwg.mxu0
    %v563 = vmin.f32 %v482, %v560
    %vm564 = vcmask 523264
    %v565 = vsel %vm564, %v563, -inf
    %566 = vmax.xlane.f32.xlu0 %v565
    %v567 = vpop.xlane.xlu0 %566
    %vm568 = vcmask 1048064
    %v569 = vsel %vm568, %v563, -inf
    %570 = vmax.xlane.f32.xlu0 %v569
    %v571 = vpop.xlane.xlu0 %570
    %vm572 = vcmask 7168
    %v573 = vsel %vm572, %v567, %v571
    %v574 = vld [vmem:[#allocation10] sm:$0x3]
    %vm575 = vcmask 15360
    %v577 = vsel %vm575, %v573, 0
    %vm579 = vcmask 1041408
    %v581 = vsel %vm579, %v574, 0
    %583 = vmatprep.subr.mxu0 0.0
    %584 = vmatpush1.msra.mxu0 %v581
    %585 = vmatprep.subr.mxu0 0.0
    %586 = vmatpush1.msra.mxu0 0.0
    %587 = vmatprep.subr.mxu0 0.0
    %588 = vmatpush1.msra.mxu0 0.0
    %589 = vmatprep.subr.mxu0 0.0
    %590 = vmatpush1.msra.mxu0 0.0
    %591 = vmatprep.subr.mxu0 0.0
    %592 = vmatpush1.msra.mxu0 0.0
    %593 = vmatprep.subr.mxu0 0.0
    %594 = vmatpush1.msra.mxu0 0.0
    %595 = vmatprep.subr.mxu0 0.0
    %596 = vmatpush1.msra.mxu0 0.0
    %597 = vmatprep.subr.mxu0 0.0
    %598 = vmatpush1.msra.mxu0 0.0
    %599 = vmatprep.subr.mxu0 0.0
    %600 = vmatpush1.msra.mxu0 0.0
    %601 = vmatprep.subr.mxu0 0.0
    %602 = vmatpush1.msra.mxu0 0.0
    %603 = vmatprep.subr.mxu0 0.0
    %604 = vmatpush1.msra.mxu0 0.0
    %605 = vmatprep.subr.mxu0 0.0
    %606 = vmatpush1.msra.mxu0 0.0
    %607 = vmatprep.subr.mxu0 0.0
    %608 = vmatpush1.msra.mxu0 0.0
    %609 = vmatprep.subr.mxu0 0.0
    %610 = vmatpush1.msra.mxu0 0.0
    %611 = vmatprep.subr.mxu0 0.0
    %612 = vmatpush1.msra.mxu0 0.0
    %613 = vmatprep.subr.mxu0 0.0
    %614 = vmatpush1.msra.mxu0 0.0
    %615 = vmatprep.subr.mxu0 0.0
    %616 = vmatpush1.msra.mxu0 0.0
    %617 = vmatprep.subr.mxu0 0.0
    %618 = vmatpush1.msra.mxu0 0.0
    %619 = vmatprep.subr.mxu0 0.0
    %620 = vmatpush1.msra.mxu0 0.0
    %621 = vmatprep.subr.mxu0 0.0
    %622 = vmatpush1.msra.mxu0 0.0
    %623 = vmatprep.subr.mxu0 0.0
    %624 = vmatpush1.msra.mxu0 0.0
    %625 = vmatprep.subr.mxu0 0.0
    %626 = vmatpush1.msra.mxu0 0.0
    %627 = vmatprep.subr.mxu0 0.0
    %628 = vmatpush1.msra.mxu0 0.0
    %629 = vmatprep.subr.mxu0 0.0
    %630 = vmatpush1.msra.mxu0 0.0
    %631 = vmatprep.subr.mxu0 0.0
    %632 = vmatpush1.msra.mxu0 0.0
    %633 = vmatprep.subr.mxu0 0.0
    %634 = vmatpush1.msra.mxu0 0.0
    %635 = vmatprep.subr.mxu0 0.0
    %636 = vmatpush1.msra.mxu0 0.0
    %637 = vmatprep.subr.mxu0 0.0
    %638 = vmatpush1.msra.mxu0 0.0
    %639 = vmatprep.subr.mxu0 0.0
    %640 = vmatpush1.msra.mxu0 0.0
    %641 = vmatprep.subr.mxu0 0.0
    %642 = vmatpush1.msra.mxu0 0.0
    %643 = vmatprep.subr.mxu0 0.0
    %644 = vmatpush1.msra.mxu0 0.0
    %645 = vmatprep.subr.mxu0 0.0
    %646 = vmatpush1.msra.mxu0 0.0
    %647 = vmatprep.mubr.f32.mxu0 0.0
    %648 = vmatmul.mubr.f32.gmra.mrb[0].mxu0 %v577
    %v649 = vpop.f32.mrb[0].mxu0
    %v650 = vadd.f32 0.0, %v649
    %v651 = vpop.f32.mrb[0].mxu0
    %652 = vdwg.mxu0
    %v653 = vsub.f32 %v563, %v650
    %v654 = vmul.f32 %v653, 1.442695
    %v655 = vpow.pop %v654
    %v656 = vsel %vm564, %v655, 0.0
    %657 = vadd.xlane.f32.xlu0 %v656
    %v658 = vpop.xlane.xlu0 %657
    %660 = vrot.lane.b32.xlu0 %v655, 64
    %v661 = vpop.permute.xlu0 %660
    %v663 = vsel %vm564, %v661, 0.0
    %664 = vadd.xlane.f32.xlu0 %v663
    %v665 = vpop.xlane.xlu0 %664
    %v666 = vsel %vm572, %v658, %v665
    %v668 = vsel %vm575, %v666, 0
    %670 = vmatprep.subr.mxu0 0.0
    %671 = vmatpush1.msra.mxu0 %v581
    %672 = vmatprep.subr.mxu0 0.0
    %673 = vmatpush1.msra.mxu0 0.0
    %674 = vmatprep.subr.mxu0 0.0
    %675 = vmatpush1.msra.mxu0 0.0
    %676 = vmatprep.subr.mxu0 0.0
    %677 = vmatpush1.msra.mxu0 0.0
    %678 = vmatprep.subr.mxu0 0.0
    %679 = vmatpush1.msra.mxu0 0.0
    %680 = vmatprep.subr.mxu0 0.0
    %681 = vmatpush1.msra.mxu0 0.0
    %682 = vmatprep.subr.mxu0 0.0
    %683 = vmatpush1.msra.mxu0 0.0
    %684 = vmatprep.subr.mxu0 0.0
    %685 = vmatpush1.msra.mxu0 0.0
    %686 = vmatprep.subr.mxu0 0.0
    %687 = vmatpush1.msra.mxu0 0.0
    %688 = vmatprep.subr.mxu0 0.0
    %689 = vmatpush1.msra.mxu0 0.0
    %690 = vmatprep.subr.mxu0 0.0
    %691 = vmatpush1.msra.mxu0 0.0
    %692 = vmatprep.subr.mxu0 0.0
    %693 = vmatpush1.msra.mxu0 0.0
    %694 = vmatprep.subr.mxu0 0.0
    %695 = vmatpush1.msra.mxu0 0.0
    %696 = vmatprep.subr.mxu0 0.0
    %697 = vmatpush1.msra.mxu0 0.0
    %698 = vmatprep.subr.mxu0 0.0
    %699 = vmatpush1.msra.mxu0 0.0
    %700 = vmatprep.subr.mxu0 0.0
    %701 = vmatpush1.msra.mxu0 0.0
    %702 = vmatprep.subr.mxu0 0.0
    %703 = vmatpush1.msra.mxu0 0.0
    %704 = vmatprep.subr.mxu0 0.0
    %705 = vmatpush1.msra.mxu0 0.0
    %706 = vmatprep.subr.mxu0 0.0
    %707 = vmatpush1.msra.mxu0 0.0
    %708 = vmatprep.subr.mxu0 0.0
    %709 = vmatpush1.msra.mxu0 0.0
    %710 = vmatprep.subr.mxu0 0.0
    %711 = vmatpush1.msra.mxu0 0.0
    %712 = vmatprep.subr.mxu0 0.0
    %713 = vmatpush1.msra.mxu0 0.0
    %714 = vmatprep.subr.mxu0 0.0
    %715 = vmatpush1.msra.mxu0 0.0
    %716 = vmatprep.subr.mxu0 0.0
    %717 = vmatpush1.msra.mxu0 0.0
    %718 = vmatprep.subr.mxu0 0.0
    %719 = vmatpush1.msra.mxu0 0.0
    %720 = vmatprep.subr.mxu0 0.0
    %721 = vmatpush1.msra.mxu0 0.0
    %722 = vmatprep.subr.mxu0 0.0
    %723 = vmatpush1.msra.mxu0 0.0
    %724 = vmatprep.subr.mxu0 0.0
    %725 = vmatpush1.msra.mxu0 0.0
    %726 = vmatprep.subr.mxu0 0.0
    %727 = vmatpush1.msra.mxu0 0.0
    %728 = vmatprep.subr.mxu0 0.0
    %729 = vmatpush1.msra.mxu0 0.0
    %730 = vmatprep.subr.mxu0 0.0
    %731 = vmatpush1.msra.mxu0 0.0
    %732 = vmatprep.subr.mxu0 0.0
    %733 = vmatpush1.msra.mxu0 0.0
    %734 = vmatprep.mubr.f32.mxu0 0.0
    %735 = vmatmul.mubr.f32.gmra.mrb[0].mxu0 %v668
    %v736 = vpop.f32.mrb[0].mxu0
    %v737 = vadd.f32 0.0, %v736
    %v738 = vpop.f32.mrb[0].mxu0
    %739 = vdwg.mxu0
    %v740 = vrcp.pop %v737
    %v741 = vmul.f32 %v655, %v740
    %v742 = vpack.c.bf16 %v741, %v741
    %v743 = vld [vmem:[%s12] sm:$0xf]
    %v744 = vld [vmem:[%s12 + $0x4] sm:$0xf]
    %v745 = vld [vmem:[%s12 + $0x8] sm:$0xf]
    %v746 = vld [vmem:[%s12 + $0xc] sm:$0xf]
    %v747 = vld [vmem:[%s12 + $0x10] sm:$0xf]
    %v748 = vld [vmem:[%s12 + $0x14] sm:$0xf]
    %v749 = vld [vmem:[%s12 + $0x18] sm:$0xf]
    %v750 = vld [vmem:[%s12 + $0x1c] sm:$0xf]
    %v751 = vld [vmem:[%s12 + $0x20] sm:$0xf]
    %v752 = vld [vmem:[%s12 + $0x24] sm:$0xf]
    %v753 = vld [vmem:[%s12 + $0x28] sm:$0xf]
    %v754 = vld [vmem:[%s12 + $0x2c] sm:$0xf]
    %v755 = vld [vmem:[%s12 + $0x30] sm:$0xf]
    %v756 = vld [vmem:[%s12 + $0x34] sm:$0xf]
    %v757 = vld [vmem:[%s12 + $0x38] sm:$0xf]
    %v758 = vld [vmem:[%s12 + $0x3c] sm:$0xf]
    %v775 = vunpack.c.l.b16 %v743
    %v776 = vunpack.c.l.b16 %v744
    %v777 = vunpack.c.l.b16 %v745
    %v778 = vunpack.c.l.b16 %v746
    %v779 = vunpack.c.l.b16 %v747
    %v780 = vunpack.c.l.b16 %v748
    %v781 = vunpack.c.l.b16 %v749
    %v782 = vunpack.c.l.b16 %v750
    %v783 = vunpack.c.l.b16 %v751
    %v784 = vunpack.c.l.b16 %v752
    %v785 = vunpack.c.l.b16 %v753
    %v786 = vunpack.c.l.b16 %v754
    %v787 = vunpack.c.l.b16 %v755
    %v788 = vunpack.c.l.b16 %v756
    %v789 = vunpack.c.l.b16 %v757
    %v790 = vunpack.c.l.b16 %v758
    %v791 = vpack.c.b16 %v776, %v775
    %v792 = vpack.c.b16 %v778, %v777
    %v793 = vpack.c.b16 %v780, %v779
    %v794 = vpack.c.b16 %v782, %v781
    %v795 = vpack.c.b16 %v784, %v783
    %v796 = vpack.c.b16 %v786, %v785
    %v797 = vpack.c.b16 %v788, %v787
    %v798 = vpack.c.b16 %v790, %v789
    %807 = vmatprep.subr.bf16.mxu0 0
    %808 = vmatpush1.bf16.msra.mxu0 %v791
    %809 = vmatprep.subr.bf16.mxu0 0
    %810 = vmatpush1.bf16.msra.mxu0 %v792
    %811 = vmatprep.subr.bf16.mxu0 0
    %812 = vmatpush1.bf16.msra.mxu0 %v793
    %813 = vmatprep.subr.bf16.mxu0 0
    %814 = vmatpush1.bf16.msra.mxu0 %v794
    %815 = vmatprep.subr.bf16.mxu0 0
    %816 = vmatpush1.bf16.msra.mxu0 %v795
    %817 = vmatprep.subr.bf16.mxu0 0
    %818 = vmatpush1.bf16.msra.mxu0 %v796
    %819 = vmatprep.subr.bf16.mxu0 0
    %820 = vmatpush1.bf16.msra.mxu0 %v797
    %821 = vmatprep.subr.bf16.mxu0 0
    %822 = vmatpush1.bf16.msra.mxu0 %v798
    %823 = vmatprep.subr.bf16.mxu0 0
    %824 = vmatpush1.bf16.msra.mxu0 0
    %825 = vmatprep.subr.bf16.mxu0 0
    %826 = vmatpush1.bf16.msra.mxu0 0
    %827 = vmatprep.subr.bf16.mxu0 0
    %828 = vmatpush1.bf16.msra.mxu0 0
    %829 = vmatprep.subr.bf16.mxu0 0
    %830 = vmatpush1.bf16.msra.mxu0 0
    %831 = vmatprep.subr.bf16.mxu0 0
    %832 = vmatpush1.bf16.msra.mxu0 0
    %833 = vmatprep.subr.bf16.mxu0 0
    %834 = vmatpush1.bf16.msra.mxu0 0
    %835 = vmatprep.subr.bf16.mxu0 0
    %836 = vmatpush1.bf16.msra.mxu0 0
    %837 = vmatprep.subr.bf16.mxu0 0
    %838 = vmatpush1.bf16.msra.mxu0 0
    %839 = vmatprep.mubr.bf16.mxu0 0
    %840 = vmatmul.mubr.bf16.gmra.mrb[0].mxu0 %v742
    %v841 = vpop.f32.mrb[0].mxu0
    %v842 = vadd.f32 0.0, %v841
    %v843 = vpop.f32.mrb[0].mxu0
    %v844 = vpop.f32.mrb[0].mxu0
    %v845 = vpop.f32.mrb[0].mxu0
    %846 = vdwg.mxu0
    %847 = vst.msk [vmem:[#allocation12] sm:$0xff] %vm489, %v842
    %v848 = vmul.f32 %v741, %v376
    %v849 = vpack.c.bf16 %v848, %v848
    %v850 = vld [vmem:[%s10] sm:$0xf]
    %v851 = vld [vmem:[%s10 + $0x4] sm:$0xf]
    %v852 = vld [vmem:[%s10 + $0x8] sm:$0xf]
    %v853 = vld [vmem:[%s10 + $0xc] sm:$0xf]
    %v854 = vld [vmem:[%s10 + $0x10] sm:$0xf]
    %v855 = vld [vmem:[%s10 + $0x14] sm:$0xf]
    %v856 = vld [vmem:[%s10 + $0x18] sm:$0xf]
    %v857 = vld [vmem:[%s10 + $0x1c] sm:$0xf]
    %v858 = vld [vmem:[%s10 + $0x20] sm:$0xf]
    %v859 = vld [vmem:[%s10 + $0x24] sm:$0xf]
    %v860 = vld [vmem:[%s10 + $0x28] sm:$0xf]
    %v861 = vld [vmem:[%s10 + $0x2c] sm:$0xf]
    %v862 = vld [vmem:[%s10 + $0x30] sm:$0xf]
    %v863 = vld [vmem:[%s10 + $0x34] sm:$0xf]
    %v864 = vld [vmem:[%s10 + $0x38] sm:$0xf]
    %v865 = vld [vmem:[%s10 + $0x3c] sm:$0xf]
    %v866 = vld [vmem:[%s11] sm:$0x7]
    %v867 = vlaneseq
    %v868 = vshrl.u32 %v867, 7
    %v869 = vsub.s32 0, %v868
    %v870 = vrot.slane %v866, %v869
    %v887 = vunpack.c.l.b16 %v850
    %v888 = vunpack.c.l.b16 %v851
    %v889 = vunpack.c.l.b16 %v852
    %v890 = vunpack.c.l.b16 %v853
    %v891 = vunpack.c.l.b16 %v854
    %v892 = vunpack.c.l.b16 %v855
    %v893 = vunpack.c.l.b16 %v856
    %v894 = vunpack.c.l.b16 %v857
    %v895 = vunpack.c.l.b16 %v858
    %v896 = vunpack.c.l.b16 %v859
    %v897 = vunpack.c.l.b16 %v860
    %v898 = vunpack.c.l.b16 %v861
    %v899 = vunpack.c.l.b16 %v862
    %v900 = vunpack.c.l.b16 %v863
    %v901 = vunpack.c.l.b16 %v864
    %v902 = vunpack.c.l.b16 %v865
    %v903 = vpack.c.b16 %v888, %v887
    %v904 = vpack.c.b16 %v890, %v889
    %v905 = vpack.c.b16 %v892, %v891
    %v906 = vpack.c.b16 %v894, %v893
    %v907 = vpack.c.b16 %v896, %v895
    %v908 = vpack.c.b16 %v898, %v897
    %v909 = vpack.c.b16 %v900, %v899
    %v910 = vpack.c.b16 %v902, %v901
    %919 = vmatprep.subr.bf16.mxu0 0
    %920 = vmatpush1.bf16.msra.mxu0 %v903
    %921 = vmatprep.subr.bf16.mxu0 0
    %922 = vmatpush1.bf16.msra.mxu0 %v904
    %923 = vmatprep.subr.bf16.mxu0 0
    %924 = vmatpush1.bf16.msra.mxu0 %v905
    %925 = vmatprep.subr.bf16.mxu0 0
    %926 = vmatpush1.bf16.msra.mxu0 %v906
    %927 = vmatprep.subr.bf16.mxu0 0
    %928 = vmatpush1.bf16.msra.mxu0 %v907
    %929 = vmatprep.subr.bf16.mxu0 0
    %930 = vmatpush1.bf16.msra.mxu0 %v908
    %931 = vmatprep.subr.bf16.mxu0 0
    %932 = vmatpush1.bf16.msra.mxu0 %v909
    %933 = vmatprep.subr.bf16.mxu0 0
    %934 = vmatpush1.bf16.msra.mxu0 %v910
    %935 = vmatprep.subr.bf16.mxu0 0
    %936 = vmatpush1.bf16.msra.mxu0 0
    %937 = vmatprep.subr.bf16.mxu0 0
    %938 = vmatpush1.bf16.msra.mxu0 0
    %939 = vmatprep.subr.bf16.mxu0 0
    %940 = vmatpush1.bf16.msra.mxu0 0
    %941 = vmatprep.subr.bf16.mxu0 0
    %942 = vmatpush1.bf16.msra.mxu0 0
    %943 = vmatprep.subr.bf16.mxu0 0
    %944 = vmatpush1.bf16.msra.mxu0 0
    %945 = vmatprep.subr.bf16.mxu0 0
    %946 = vmatpush1.bf16.msra.mxu0 0
    %947 = vmatprep.subr.bf16.mxu0 0
    %948 = vmatpush1.bf16.msra.mxu0 0
    %949 = vmatprep.subr.bf16.mxu0 0
    %950 = vmatpush1.bf16.msra.mxu0 0
    %951 = vmatprep.mubr.bf16.mxu0 0
    %952 = vmatmul.mubr.bf16.gmra.mrb[0].mxu0 %v849
    %v953 = vpop.f32.mrb[0].mxu0
    %v954 = vadd.f32 %v870, %v953
    %v955 = vpop.f32.mrb[0].mxu0
    %v956 = vpop.f32.mrb[0].mxu0
    %v957 = vpop.f32.mrb[0].mxu0
    %958 = vdwg.mxu0
    %v959 = vadd.f32 %v954, %v109
    %v960 = vsel %vm127, %v959, 0.0
    %961 = vadd.xlane.f32.xlu0 %v960
    %v962 = vpop.xlane.xlu0 %961
    %v963 = vrcp.pop 32.0
    %v964 = vmul.f32 %v962, %v963
    %v965 = vsub.f32 %v959, %v964
    %v966 = vmul.f32 %v965, %v965
    %v967 = vsel %vm127, %v966, 0.0
    %968 = vadd.xlane.f32.xlu0 %v967
    %v969 = vpop.xlane.xlu0 %968
    %v970 = vmul.f32 %v969, %v963
    %v971 = vadd.f32 %v970, 1e-05
    %v972 = vrsqrt.pop %v971
    %v973 = vmul.f32 %v965, %v972
    %v974 = vlaneseq
    %v975 = vshrl.u32 %v974, 7
    %v976 = vsub.s32 1, %v975
    %v977 = vrot.slane %v866, %v976
    %v978 = vmul.f32 %v973, %v977
    %v979 = vlaneseq
    %v980 = vshrl.u32 %v979, 7
    %v981 = vsub.s32 2, %v980
    %v982 = vrot.slane %v866, %v981
    %v983 = vadd.f32 %v978, %v982
    %984 = vst.msk [vmem:[#allocation11] sm:$0xff] %vm127, %v983
    // Predicated region
    $region74: #{tpu_custom_call.1} parent=1 // pred_check
      _
    $region75: #{tpu_custom_call.1} parent=1 // pred_check_branch
      %986 = sbr.rel (0) target = $region77
    $region76: #{tpu_custom_call.1} parent=1 // pred_region
      %s988 = ssub.s32 128, 128
      %989 = vsyncadd [#allocation4], %s988
      %s991 = sshll.u32 [#allocation11], 4
      %s992 = int_to_ptr.vmem [resolvable:$true] %s991
      %994 = dma.vmem_to_hbm [thread:$0]  %s992, 128, %s13, [#allocation4]
    $region77: #{tpu_custom_call.1} parent=1 // pred_fallthru
      _
    // Predicated region
    $region78: #{tpu_custom_call.1} parent=1 // pred_check
      _
    $region79: #{tpu_custom_call.1} parent=1 // pred_check_branch
      %996 = sbr.rel (0) target = $region81
    $region80: #{tpu_custom_call.1} parent=1 // pred_region
      %s998 = ssub.s32 128, 128
      %999 = vsyncadd [#allocation13], %s998
      %s1001 = sshll.u32 [#allocation12], 4
      %s1002 = int_to_ptr.vmem [resolvable:$true] %s1001
      %1004 = dma.vmem_to_hbm [thread:$0]  %s1002, 128, %s14, [#allocation13]
    $region81: #{tpu_custom_call.1} parent=1 // pred_fallthru
      _
    // Predicated region
    $region82: #{tpu_custom_call.1} parent=1 // pred_check
      _
    $region83: #{tpu_custom_call.1} parent=1 // pred_check_branch
      %1006 = sbr.rel (0) target = $region85
    $region84: #{tpu_custom_call.1} parent=1 // pred_region
      %1007 = dma.done [#allocation4], 128
    $region85: #{tpu_custom_call.1} parent=1 // pred_fallthru
      _
    // Predicated region
    $region86: #{tpu_custom_call.1} parent=1 // pred_check
      _
    $region87: #{tpu_custom_call.1} parent=1 // pred_check_branch
      %1009 = sbr.rel (0) target = $region89
    $region88: #{tpu_custom_call.1} parent=1 // pred_region
      %1010 = dma.done [#allocation13], 128
    $region89: #{tpu_custom_call.1} parent=1 // pred_fallthru
      _
    %1011 = vsyncpa [#allocation3], 1
    %1012 = vsyncpa [#allocation6], 1
    %1013 = vsyncpa [#allocation9], 1
    %1014 = vsyncpa [#allocation4], 1
    %1015 = vsyncpa [#allocation13], 1

</llo_original>
